<compile_context>
chip_gen: v7x
topology: tpu7x:2x2x1
jax: 0.10.0
libtpu: 0.0.40
codegen_flags: <defaults>
</compile_context>

<pallas_src>
import jax
import jax.numpy as jnp
from jax.experimental import pallas as pl
from jax.experimental.pallas import tpu as pltpu


def _round_up(n, m):
    return ((n + m - 1) // m) * m


def _apply_act(h, a):
    if a == 'relu':
        return jnp.maximum(h, 0.0)
    if a == 'tanh':
        return jnp.tanh(h)
    if a == 'sigmoid':
        return jax.nn.sigmoid(h)
    if a == 'linear':
        return h
    raise NotImplementedError(a)


def _make_mine_kernel(activations, n_layers, reduce_last):
    """Kernel closed over the static activation schedule / layer count."""
    acts = [a.lower() for a in activations]

    def kernel(x_ref, y_ref, wx_ref, wy_ref, bh_ref, *rest):
        out_ref = rest[-1]
        layer_refs = rest[:-1]

        # Input heads: relu(x @ Wx + y @ Wy + (bx + by)).
        # bf16 operands on the MXU, f32 accumulation; head biases were fused
        # into a single bias in the wrapper.
        h = (jnp.dot(x_ref[...], wx_ref[...], preferred_element_type=jnp.float32)
             + jnp.dot(y_ref[...], wy_ref[...], preferred_element_type=jnp.float32)
             + bh_ref[...])
        h = jnp.maximum(h, 0.0)

        if n_layers == 0:
            out_ref[...] = h
            return

        # Hidden layers on the MXU (f32).  Layer l uses activations[l + 1],
        # matching the torch loop.  (Static Python loop -> traced once, so
        # bias broadcasts are not re-materialized per iteration.)
        n_mxu = n_layers - 1 if reduce_last else n_layers
        for l in range(n_mxu):
            w = layer_refs[2 * l][...]
            b = layer_refs[2 * l + 1][...]
            h = _apply_act(jnp.dot(h, w, preferred_element_type=jnp.float32) + b,
                           acts[l + 1])

        if reduce_last:
            # Final (H, 1) layer: VPU multiply + XLU lane reduction instead of
            # a 1-column (lane-sparse) MXU matmul.
            w_last = layer_refs[-2][...]          # (1, H_last), pre-transposed
            b_last = layer_refs[-1][...]          # (1, 1)
            h = _apply_act(jnp.sum(h * w_last, axis=-1, keepdims=True) + b_last,
                           acts[n_layers])

        out_ref[...] = h

    return kernel


def init_mine_params(key, input_space_dim, layer_sizes):
    """Deterministic PyTorch-style Linear init. layer_sizes includes the final 1."""
    def linear(k, fan_in, fan_out):
        kw, kb, k = jax.random.split(k, 3)
        bound = 1.0 / float(fan_in) ** 0.5
        w = jax.random.uniform(kw, (fan_in, fan_out), jnp.float32, -bound, bound)
        b = jax.random.uniform(kb, (1, fan_out), jnp.float32, -bound, bound)
        return (w, b), k

    params = {}
    k = key
    params['head_x'], k = linear(k, input_space_dim, layer_sizes[0])
    params['head_y'], k = linear(k, input_space_dim, layer_sizes[0])
    layers = []
    for l in range(len(layer_sizes) - 1):
        wb, k = linear(k, layer_sizes[l], layer_sizes[l + 1])
        layers.append(wb)
    params['layers'] = layers
    return params


def mine_forward(params, x, y, activations, *, tb=1024, input_dtype=jnp.bfloat16):
    B, D = x.shape
    n_layers = len(params['layers'])
    out_dim = (params['layers'][-1][0].shape[1] if n_layers
               else params['head_x'][0].shape[1])
    reduce_last = (n_layers > 0) and (out_dim == 1)

    # Batch tile: as large as allowed (amortizes per-step overhead), multiple
    # of 8 sublanes, capped by the (rounded-up) batch.
    tb = max(8, min(tb, _round_up(B, 8)))
    Bp = _round_up(B, tb)
    if Bp != B:
        pad = Bp - B
        x = jnp.pad(x, ((0, pad), (0, 0)))
        y = jnp.pad(y, ((0, pad), (0, 0)))

    # HBM-bound inputs (and head weights) in bf16 to halve HBM read bytes;
    # accumulation and all post-matmul math stays f32.
    x_c = x.astype(input_dtype)
    y_c = y.astype(input_dtype)
    wx = params['head_x'][0].astype(input_dtype)
    wy = params['head_y'][0].astype(input_dtype)
    b_head = (params['head_x'][1] + params['head_y'][1]).astype(jnp.float32)

    flat_inputs = [x_c, y_c, wx, wy, b_head]
    for l, (w, b) in enumerate(params['layers']):
        if reduce_last and l == n_layers - 1:
            flat_inputs += [w.T.reshape(1, -1), b.reshape(1, 1)]
        else:
            flat_inputs += [w, b]

    batch_spec = pl.BlockSpec((tb, D), lambda i: (i, 0))
    const_spec = lambda a: pl.BlockSpec(a.shape, lambda i: (0, 0))
    in_specs = [batch_spec, batch_spec] + [const_spec(a) for a in flat_inputs[2:]]
    out_specs = pl.BlockSpec((tb, out_dim), lambda i: (i, 0))

    kernel = _make_mine_kernel(activations, n_layers, reduce_last)

    out = pl.pallas_call(
        kernel,
        out_shape=jax.ShapeDtypeStruct((Bp, out_dim), jnp.float32),
        grid=(Bp // tb,),
        in_specs=in_specs,
        out_specs=out_specs,
        compiler_params=pltpu.CompilerParams(
            dimension_semantics=("parallel",),
            vmem_limit_bytes=32 * 1024 * 1024,
        ),
    )(*flat_inputs)

    # Restore torch's (B, 1, out_dim) shape coming from unsqueeze(x, 1).
    return out[:B].reshape(B, 1, out_dim)


def mine_forward_ref(params, x, y, activations, input_dtype=jnp.bfloat16):
    """Plain-JAX reference mirroring the kernel's bf16 input / head-weight cast."""
    f32 = jnp.float32
    xc = x.astype(input_dtype).astype(f32)
    yc = y.astype(input_dtype).astype(f32)
    wx = params['head_x'][0].astype(input_dtype).astype(f32)
    wy = params['head_y'][0].astype(input_dtype).astype(f32)
    h = (xc[:, None, :] @ wx + params['head_x'][1]
         + yc[:, None, :] @ wy + params['head_y'][1])
    h = jnp.maximum(h, 0.0)
    for l, (w, b) in enumerate(params['layers']):
        h = h @ w + b
        a = activations[l + 1].lower()
        if a == 'relu':
            h = jnp.maximum(h, 0.0)
        elif a == 'tanh':
            h = jnp.tanh(h)
        elif a == 'sigmoid':
            h = jax.nn.sigmoid(h)
    return h


if __name__ == "__main__":
    # Shapes consistent with the module:
    #   inputSpaceDim=4, archSpecs = {'layerSizes': [32, 32],
    #                                 'activationFunctions': ['relu', 'relu']}
    input_space_dim = 4
    arch_layer_sizes = [32, 32]
    activations = ['relu', 'relu', 'linear']   # archSpecs acts + appended 'linear'
    layer_sizes = arch_layer_sizes + [1]       # + [1] as in __init__

    key = jax.random.PRNGKey(0)
    kp, kd = jax.random.split(key)
    params = init_mine_params(kp, input_space_dim, layer_sizes)

    # Case 1: tiny batch (single grid step, block == full batch).
    B = 8
    kx, ky = jax.random.split(jax.random.fold_in(kd, 0))
    x = jax.random.normal(kx, (B, input_space_dim), jnp.float32)
    y = jax.random.normal(ky, (B, input_space_dim), jnp.float32)
    out = jax.block_until_ready(mine_forward(params, x, y, activations))
    assert out.shape == (B, 1, 1), out.shape
    ref = mine_forward_ref(params, x, y, activations)
    assert jnp.allclose(out, ref, atol=1e-4, rtol=1e-4), \
        float(jnp.max(jnp.abs(out - ref)))

    # Case 2: non-multiple batch with an explicit small tile -> multi-step grid
    # (exercises pipelining, padding and VMEM-resident weight reuse).
    B2 = 300
    kx2, ky2 = jax.random.split(jax.random.fold_in(kd, 1))
    x2 = jax.random.normal(kx2, (B2, input_space_dim), jnp.float32)
    y2 = jax.random.normal(ky2, (B2, input_space_dim), jnp.float32)
    out2 = jax.block_until_ready(mine_forward(params, x2, y2, activations, tb=128))
    assert out2.shape == (B2, 1, 1), out2.shape
    ref2 = mine_forward_ref(params, x2, y2, activations)
    assert jnp.allclose(out2, ref2, atol=1e-4, rtol=1e-4), \
        float(jnp.max(jnp.abs(out2 - ref2)))

    # TODO(synk): calcMI training loop (Adam, logSumExp objective) is host-side
    # optimization logic, not part of the forward pass, and is not a kernel.
    print("KERNEL_OK")
</pallas_src>

<mosaic_0001>
module attributes {stable_mosaic.version = 11 : i64} {
  func.func @kernel(%arg0: i32, %arg1: memref<8x4xbf16, #tpu.memory_space<vmem>>, %arg2: memref<8x4xbf16, #tpu.memory_space<vmem>>, %arg3: memref<4x32xbf16, #tpu.memory_space<vmem>>, %arg4: memref<4x32xbf16, #tpu.memory_space<vmem>>, %arg5: memref<1x32xf32, #tpu.memory_space<vmem>>, %arg6: memref<32x32xf32, #tpu.memory_space<vmem>>, %arg7: memref<1x32xf32, #tpu.memory_space<vmem>>, %arg8: memref<1x32xf32, #tpu.memory_space<vmem>>, %arg9: memref<1x1xf32, #tpu.memory_space<vmem>>, %arg10: memref<8x1xf32, #tpu.memory_space<vmem>>) attributes {dimension_semantics = [#tpu.dimension_semantics<parallel>], iteration_bounds = array<i64: 1>, scalar_prefetch = 0 : i64, scratch_operands = 0 : i64, tpu.core_type = #tpu.core_type<tc>, window_params = [{transform_indices = @transform_0, window_bounds = array<i64: 8, 4>}, {transform_indices = @transform_1, window_bounds = array<i64: 8, 4>}, {pipeline_mode = #tpu.pipeline_mode<synchronous>, transform_indices = @transform_2, window_bounds = array<i64: 4, 32>}, {pipeline_mode = #tpu.pipeline_mode<synchronous>, transform_indices = @transform_3, window_bounds = array<i64: 4, 32>}, {pipeline_mode = #tpu.pipeline_mode<synchronous>, transform_indices = @transform_4, window_bounds = array<i64: 1, 32>}, {pipeline_mode = #tpu.pipeline_mode<synchronous>, transform_indices = @transform_5, window_bounds = array<i64: 32, 32>}, {pipeline_mode = #tpu.pipeline_mode<synchronous>, transform_indices = @transform_6, window_bounds = array<i64: 1, 32>}, {pipeline_mode = #tpu.pipeline_mode<synchronous>, transform_indices = @transform_7, window_bounds = array<i64: 1, 32>}, {pipeline_mode = #tpu.pipeline_mode<synchronous>, transform_indices = @transform_8, window_bounds = array<i64: 1, 1>}, {transform_indices = @transform_9, window_bounds = array<i64: 8, 1>}]} {
    %c0 = arith.constant 0 : index
    %c0_0 = arith.constant 0 : index
    %0 = vector.load %arg1[%c0, %c0_0] : memref<8x4xbf16, #tpu.memory_space<vmem>>, vector<8x4xbf16>
    %c0_1 = arith.constant 0 : index
    %c0_2 = arith.constant 0 : index
    %1 = vector.load %arg3[%c0_1, %c0_2] : memref<4x32xbf16, #tpu.memory_space<vmem>>, vector<4x32xbf16>
    %cst = arith.constant dense<0.000000e+00> : vector<8x32xf32>
    %2 = tpu.matmul %0, %1, %cst {dimension_numbers = #tpu.dot_dimension_numbers<[1], [0], [0], [1], [0, 0, 1, 1], [], []>} : vector<8x4xbf16>, vector<4x32xbf16>, vector<8x32xf32> -> vector<8x32xf32>
    %c0_3 = arith.constant 0 : index
    %c0_4 = arith.constant 0 : index
    %3 = vector.load %arg2[%c0_3, %c0_4] : memref<8x4xbf16, #tpu.memory_space<vmem>>, vector<8x4xbf16>
    %c0_5 = arith.constant 0 : index
    %c0_6 = arith.constant 0 : index
    %4 = vector.load %arg4[%c0_5, %c0_6] : memref<4x32xbf16, #tpu.memory_space<vmem>>, vector<4x32xbf16>
    %cst_7 = arith.constant dense<0.000000e+00> : vector<8x32xf32>
    %5 = tpu.matmul %3, %4, %cst_7 {dimension_numbers = #tpu.dot_dimension_numbers<[1], [0], [0], [1], [0, 0, 1, 1], [], []>} : vector<8x4xbf16>, vector<4x32xbf16>, vector<8x32xf32> -> vector<8x32xf32>
    %6 = arith.addf %2, %5 : vector<8x32xf32>
    %c0_8 = arith.constant 0 : index
    %c0_9 = arith.constant 0 : index
    %7 = vector.load %arg5[%c0_8, %c0_9] : memref<1x32xf32, #tpu.memory_space<vmem>>, vector<1x32xf32>
    %8 = vector.broadcast %7 : vector<1x32xf32> to vector<8x32xf32>
    %9 = arith.addf %6, %8 : vector<8x32xf32>
    %cst_10 = arith.constant 0.000000e+00 : f32
    %10 = vector.broadcast %cst_10 : f32 to vector<8x32xf32>
    %11 = arith.maximumf %9, %10 : vector<8x32xf32>
    %c0_11 = arith.constant 0 : index
    %c0_12 = arith.constant 0 : index
    %12 = vector.load %arg6[%c0_11, %c0_12] : memref<32x32xf32, #tpu.memory_space<vmem>>, vector<32x32xf32>
    %c0_13 = arith.constant 0 : index
    %c0_14 = arith.constant 0 : index
    %13 = vector.load %arg7[%c0_13, %c0_14] : memref<1x32xf32, #tpu.memory_space<vmem>>, vector<1x32xf32>
    %cst_15 = arith.constant dense<0.000000e+00> : vector<8x32xf32>
    %14 = tpu.matmul %11, %12, %cst_15 {dimension_numbers = #tpu.dot_dimension_numbers<[1], [0], [0], [1], [0, 0, 1, 1], [], []>} : vector<8x32xf32>, vector<32x32xf32>, vector<8x32xf32> -> vector<8x32xf32>
    %15 = vector.broadcast %13 : vector<1x32xf32> to vector<8x32xf32>
    %16 = arith.addf %14, %15 : vector<8x32xf32>
    %cst_16 = arith.constant 0.000000e+00 : f32
    %17 = vector.broadcast %cst_16 : f32 to vector<8x32xf32>
    %18 = arith.maximumf %16, %17 : vector<8x32xf32>
    %c0_17 = arith.constant 0 : index
    %c0_18 = arith.constant 0 : index
    %19 = vector.load %arg8[%c0_17, %c0_18] : memref<1x32xf32, #tpu.memory_space<vmem>>, vector<1x32xf32>
    %c0_19 = arith.constant 0 : index
    %c0_20 = arith.constant 0 : index
    %20 = vector.load %arg9[%c0_19, %c0_20] : memref<1x1xf32, #tpu.memory_space<vmem>>, vector<1x1xf32>
    %21 = vector.broadcast %19 : vector<1x32xf32> to vector<8x32xf32>
    %22 = arith.mulf %18, %21 : vector<8x32xf32>
    %cst_21 = arith.constant dense<0.000000e+00> : vector<8xf32>
    %23 = vector.multi_reduction <add>, %22, %cst_21 [1] : vector<8x32xf32> to vector<8xf32>
    %24 = vector.shape_cast %23 : vector<8xf32> to vector<8x1xf32>
    %25 = vector.broadcast %20 : vector<1x1xf32> to vector<8x1xf32>
    %26 = arith.addf %24, %25 : vector<8x1xf32>
    %c0_22 = arith.constant 0 : index
    %c0_23 = arith.constant 0 : index
    %27 = vector.load %arg10[%c0_22, %c0_23] : memref<8x1xf32, #tpu.memory_space<vmem>>, vector<8x1xf32>
    tpu.vector_store %arg10[%c0_22, %c0_23], %26 {strides = array<i32>} : memref<8x1xf32, #tpu.memory_space<vmem>>, vector<8x1xf32>,
    return
  }
  func.func @transform_0(%arg0: i32) -> (i32, i32) {
    %c0_i32 = arith.constant 0 : i32
    %c0_i32_0 = arith.constant 0 : i32
    return %arg0, %c0_i32 : i32, i32
  }
  func.func @transform_1(%arg0: i32) -> (i32, i32) {
    %c0_i32 = arith.constant 0 : i32
    %c0_i32_0 = arith.constant 0 : i32
    return %arg0, %c0_i32 : i32, i32
  }
  func.func @transform_2(%arg0: i32) -> (i32, i32) {
    %c0_i32 = arith.constant 0 : i32
    %c0_i32_0 = arith.constant 0 : i32
    %c0_i32_1 = arith.constant 0 : i32
    return %c0_i32, %c0_i32_0 : i32, i32
  }
  func.func @transform_3(%arg0: i32) -> (i32, i32) {
    %c0_i32 = arith.constant 0 : i32
    %c0_i32_0 = arith.constant 0 : i32
    %c0_i32_1 = arith.constant 0 : i32
    return %c0_i32, %c0_i32_0 : i32, i32
  }
  func.func @transform_4(%arg0: i32) -> (i32, i32) {
    %c0_i32 = arith.constant 0 : i32
    %c0_i32_0 = arith.constant 0 : i32
    %c0_i32_1 = arith.constant 0 : i32
    return %c0_i32, %c0_i32_0 : i32, i32
  }
  func.func @transform_5(%arg0: i32) -> (i32, i32) {
    %c0_i32 = arith.constant 0 : i32
    %c0_i32_0 = arith.constant 0 : i32
    %c0_i32_1 = arith.constant 0 : i32
    return %c0_i32, %c0_i32_0 : i32, i32
  }
  func.func @transform_6(%arg0: i32) -> (i32, i32) {
    %c0_i32 = arith.constant 0 : i32
    %c0_i32_0 = arith.constant 0 : i32
    %c0_i32_1 = arith.constant 0 : i32
    return %c0_i32, %c0_i32_0 : i32, i32
  }
  func.func @transform_7(%arg0: i32) -> (i32, i32) {
    %c0_i32 = arith.constant 0 : i32
    %c0_i32_0 = arith.constant 0 : i32
    %c0_i32_1 = arith.constant 0 : i32
    return %c0_i32, %c0_i32_0 : i32, i32
  }
  func.func @transform_8(%arg0: i32) -> (i32, i32) {
    %c0_i32 = arith.constant 0 : i32
    %c0_i32_0 = arith.constant 0 : i32
    %c0_i32_1 = arith.constant 0 : i32
    return %c0_i32, %c0_i32_0 : i32, i32
  }
  func.func @transform_9(%arg0: i32) -> (i32, i32) {
    %c0_i32 = arith.constant 0 : i32
    %c0_i32_0 = arith.constant 0 : i32
    return %arg0, %c0_i32 : i32, i32
  }
}

</mosaic_0001>

<llo_original>
// kernel: tpu_custom_call.1
$region0: #{tpu_custom_call.1}
  #allocation0 [shape = 'u32[]', space=smem, size = 0x4, offset = 0x4, fixed_abs, tag = 'smem constant byte address 0x4 - core index']
  #allocation1 [shape = 'u32[144,128]{1,0:T(1,128)}', space=vmem, size = 0x12000, scoped, tag = 'internal scratch']
  #allocation2 [shape = 'f32[1,1]{1,0:T(1,128)S(1)}', space=vmem, size = 0x200, scoped, tag = 'scoped memory for tpu_custom_call.1']
  %s0 = inlined_call_operand.vmem [shape: bf16[8,4], index: 0, kind: input, shape index: {}]
  %s1 = inlined_call_operand.vmem [shape: bf16[8,4], index: 1, kind: input, shape index: {}]
  %s2 = inlined_call_operand.vmem [shape: bf16[4,32], index: 2, kind: input, shape index: {}]
  %s3 = inlined_call_operand.hbm [shape: bf16[4,32], index: 3, kind: input, shape index: {}]
  %s4 = inlined_call_operand.hbm [shape: f32[1,32], index: 4, kind: input, shape index: {}]
  %s5 = inlined_call_operand.vmem [shape: f32[32,32], index: 5, kind: input, shape index: {}]
  %s6 = inlined_call_operand.vmem [shape: f32[1,32], index: 6, kind: input, shape index: {}]
  %s7 = inlined_call_operand.vmem [shape: f32[1,32], index: 7, kind: input, shape index: {}]
  %s8 = inlined_call_operand.<no memory space> [shape: f32[1,1], index: 8, kind: input, shape index: {}]
  %s9 = inlined_call_operand.vmem [shape: f32[8,1], index: 9, kind: output, shape index: {}]
  %s10 = sld [smem:[#allocation0]]
  $region54: #{tpu_custom_call.1} parent=0
    _
  %s12 = ssub.s32 1, %s10
  %s13 = scalar_select 0, %s12, %s10
  %v14 = vstv %s8
  %15 = vst [vmem:[#allocation2] sm:$0x1] %v14
  $region1: #{tpu_custom_call.1} parent=0
    #allocation3 [shape = 'u8[1024]{0}', space=vmem, size = 0x400, scoped, tag = 'input window, operand 3, single buffered']
    #allocation4 [shape = 's32[1]{0}', space=sflag, size = 0x4, scoped, tag = 'scoped memory for tpu_custom_call.1']
    #allocation5 [shape = 'u8[512]{0}', space=vmem, size = 0x400, scoped, tag = 'input window, operand 4, single buffered']
    #allocation6 [shape = 's32[1]{0}', space=sflag, size = 0x4, scoped, tag = 'scoped memory for tpu_custom_call.1']
    %16 = vsyncpa [#allocation4], 0
    %17 = vsyncpa [#allocation6], 0
    // Predicated region
    $region2: #{tpu_custom_call.1} parent=1 // pred_check
      _
    $region3: #{tpu_custom_call.1} parent=1 // pred_check_branch
      %19 = sbr.rel (0) target = $region5
    $region4: #{tpu_custom_call.1} parent=1 // pred_region
      _
    $region5: #{tpu_custom_call.1} parent=1 // pred_fallthru
      _
    // Predicated region
    $region6: #{tpu_custom_call.1} parent=1 // pred_check
      _
    $region7: #{tpu_custom_call.1} parent=1 // pred_check_branch
      %21 = sbr.rel (0) target = $region9
    $region8: #{tpu_custom_call.1} parent=1 // pred_region
      _
    $region9: #{tpu_custom_call.1} parent=1 // pred_fallthru
      _
    // Predicated region
    $region10: #{tpu_custom_call.1} parent=1 // pred_check
      _
    $region11: #{tpu_custom_call.1} parent=1 // pred_check_branch
      %23 = sbr.rel (0) target = $region13
    $region12: #{tpu_custom_call.1} parent=1 // pred_region
      _
    $region13: #{tpu_custom_call.1} parent=1 // pred_fallthru
      _
    // Predicated region
    $region14: #{tpu_custom_call.1} parent=1 // pred_check
      _
    $region15: #{tpu_custom_call.1} parent=1 // pred_check_branch
      %25 = sbr.rel (0) target = $region17
    $region16: #{tpu_custom_call.1} parent=1 // pred_region
      %s27 = ssub.s32 32, 32
      %28 = vsyncadd [#allocation4], %s27
      %s30 = sshll.u32 [#allocation3], 4
      %s31 = int_to_ptr.vmem [resolvable:$true] %s30
      %33 = dma.hbm_to_vmem [thread:$0]  %s3, 32, %s31, [#allocation4]
    $region17: #{tpu_custom_call.1} parent=1 // pred_fallthru
      _
    // Predicated region
    $region18: #{tpu_custom_call.1} parent=1 // pred_check
      _
    $region19: #{tpu_custom_call.1} parent=1 // pred_check_branch
      %35 = sbr.rel (0) target = $region21
    $region20: #{tpu_custom_call.1} parent=1 // pred_region
      %s37 = ssub.s32 16, 16
      %38 = vsyncadd [#allocation6], %s37
      %s40 = sshll.u32 [#allocation5], 4
      %s41 = int_to_ptr.vmem [resolvable:$true] %s40
      %43 = dma.hbm_to_vmem [thread:$0]  %s4, 16, %s41, [#allocation6]
    $region21: #{tpu_custom_call.1} parent=1 // pred_fallthru
      _
    // Predicated region
    $region22: #{tpu_custom_call.1} parent=1 // pred_check
      _
    $region23: #{tpu_custom_call.1} parent=1 // pred_check_branch
      %45 = sbr.rel (0) target = $region25
    $region24: #{tpu_custom_call.1} parent=1 // pred_region
      _
    $region25: #{tpu_custom_call.1} parent=1 // pred_fallthru
      _
    // Predicated region
    $region26: #{tpu_custom_call.1} parent=1 // pred_check
      _
    $region27: #{tpu_custom_call.1} parent=1 // pred_check_branch
      %47 = sbr.rel (0) target = $region29
    $region28: #{tpu_custom_call.1} parent=1 // pred_region
      _
    $region29: #{tpu_custom_call.1} parent=1 // pred_fallthru
      _
    // Predicated region
    $region30: #{tpu_custom_call.1} parent=1 // pred_check
      _
    $region31: #{tpu_custom_call.1} parent=1 // pred_check_branch
      %49 = sbr.rel (0) target = $region33
    $region32: #{tpu_custom_call.1} parent=1 // pred_region
      _
    $region33: #{tpu_custom_call.1} parent=1 // pred_fallthru
      _
    // Predicated region
    $region34: #{tpu_custom_call.1} parent=1 // pred_check
      _
    $region35: #{tpu_custom_call.1} parent=1 // pred_check_branch
      %51 = sbr.rel (0) target = $region37
    $region36: #{tpu_custom_call.1} parent=1 // pred_region
      _
    $region37: #{tpu_custom_call.1} parent=1 // pred_fallthru
      _
    // Predicated region
    $region38: #{tpu_custom_call.1} parent=1 // pred_check
      _
    $region39: #{tpu_custom_call.1} parent=1 // pred_check_branch
      %53 = sbr.rel (0) target = $region41
    $region40: #{tpu_custom_call.1} parent=1 // pred_region
      %54 = dma.done [#allocation4], 32
    $region41: #{tpu_custom_call.1} parent=1 // pred_fallthru
      _
    // Predicated region
    $region42: #{tpu_custom_call.1} parent=1 // pred_check
      _
    $region43: #{tpu_custom_call.1} parent=1 // pred_check_branch
      %56 = sbr.rel (0) target = $region45
    $region44: #{tpu_custom_call.1} parent=1 // pred_region
      %57 = dma.done [#allocation6], 16
    $region45: #{tpu_custom_call.1} parent=1 // pred_fallthru
      _
    %v59 = vld [vmem:[%s0] sm:$0xf]
    %v60 = vld [vmem:[%s2] sm:$0x3]
    %v61 = vld [vmem:[%s1] sm:$0xf]
    %v62 = vld [vmem:[#allocation3] sm:$0x3]
    %vm63 = vcmask 31744
    %v65 = vsel %vm63, %v61, 0
    %vm67 = vcmask 1041408
    %v69 = vsel %vm67, %v62, 0
    %71 = vmatprep.subr.bf16.mxu0 0
    %72 = vmatpush1.bf16.msra.mxu0 %v69
    %73 = vmatprep.subr.bf16.mxu0 0
    %74 = vmatpush1.bf16.msra.mxu0 0
    %75 = vmatprep.subr.bf16.mxu0 0
    %76 = vmatpush1.bf16.msra.mxu0 0
    %77 = vmatprep.subr.bf16.mxu0 0
    %78 = vmatpush1.bf16.msra.mxu0 0
    %79 = vmatprep.subr.bf16.mxu0 0
    %80 = vmatpush1.bf16.msra.mxu0 0
    %81 = vmatprep.subr.bf16.mxu0 0
    %82 = vmatpush1.bf16.msra.mxu0 0
    %83 = vmatprep.subr.bf16.mxu0 0
    %84 = vmatpush1.bf16.msra.mxu0 0
    %85 = vmatprep.subr.bf16.mxu0 0
    %86 = vmatpush1.bf16.msra.mxu0 0
    %87 = vmatprep.subr.bf16.mxu0 0
    %88 = vmatpush1.bf16.msra.mxu0 0
    %89 = vmatprep.subr.bf16.mxu0 0
    %90 = vmatpush1.bf16.msra.mxu0 0
    %91 = vmatprep.subr.bf16.mxu0 0
    %92 = vmatpush1.bf16.msra.mxu0 0
    %93 = vmatprep.subr.bf16.mxu0 0
    %94 = vmatpush1.bf16.msra.mxu0 0
    %95 = vmatprep.subr.bf16.mxu0 0
    %96 = vmatpush1.bf16.msra.mxu0 0
    %97 = vmatprep.subr.bf16.mxu0 0
    %98 = vmatpush1.bf16.msra.mxu0 0
    %99 = vmatprep.subr.bf16.mxu0 0
    %100 = vmatpush1.bf16.msra.mxu0 0
    %101 = vmatprep.subr.bf16.mxu0 0
    %102 = vmatpush1.bf16.msra.mxu0 0
    %103 = vmatprep.mubr.bf16.mxu0 0
    %104 = vmatmul.mubr.bf16.gmra.mrb[0].mxu0 %v65
    %v105 = vpop.f32.mrb[0].mxu0
    %v106 = vadd.f32 0.0, %v105
    %v107 = vpop.f32.mrb[0].mxu0
    %v108 = vpop.f32.mrb[0].mxu0
    %v109 = vpop.f32.mrb[0].mxu0
    %110 = vdwg.mxu0
    %v112 = vsel %vm63, %v59, 0
    %v115 = vsel %vm67, %v60, 0
    %117 = vmatprep.subr.bf16.mxu0 0
    %118 = vmatpush1.bf16.msra.mxu0 %v115
    %119 = vmatprep.subr.bf16.mxu0 0
    %120 = vmatpush1.bf16.msra.mxu0 0
    %121 = vmatprep.subr.bf16.mxu0 0
    %122 = vmatpush1.bf16.msra.mxu0 0
    %123 = vmatprep.subr.bf16.mxu0 0
    %124 = vmatpush1.bf16.msra.mxu0 0
    %125 = vmatprep.subr.bf16.mxu0 0
    %126 = vmatpush1.bf16.msra.mxu0 0
    %127 = vmatprep.subr.bf16.mxu0 0
    %128 = vmatpush1.bf16.msra.mxu0 0
    %129 = vmatprep.subr.bf16.mxu0 0
    %130 = vmatpush1.bf16.msra.mxu0 0
    %131 = vmatprep.subr.bf16.mxu0 0
    %132 = vmatpush1.bf16.msra.mxu0 0
    %133 = vmatprep.subr.bf16.mxu0 0
    %134 = vmatpush1.bf16.msra.mxu0 0
    %135 = vmatprep.subr.bf16.mxu0 0
    %136 = vmatpush1.bf16.msra.mxu0 0
    %137 = vmatprep.subr.bf16.mxu0 0
    %138 = vmatpush1.bf16.msra.mxu0 0
    %139 = vmatprep.subr.bf16.mxu0 0
    %140 = vmatpush1.bf16.msra.mxu0 0
    %141 = vmatprep.subr.bf16.mxu0 0
    %142 = vmatpush1.bf16.msra.mxu0 0
    %143 = vmatprep.subr.bf16.mxu0 0
    %144 = vmatpush1.bf16.msra.mxu0 0
    %145 = vmatprep.subr.bf16.mxu0 0
    %146 = vmatpush1.bf16.msra.mxu0 0
    %147 = vmatprep.subr.bf16.mxu0 0
    %148 = vmatpush1.bf16.msra.mxu0 0
    %149 = vmatprep.mubr.bf16.mxu0 0
    %150 = vmatmul.mubr.bf16.gmra.mrb[0].mxu0 %v112
    %v151 = vpop.f32.mrb[0].mxu0
    %v152 = vadd.f32 %v106, %v151
    %v153 = vpop.f32.mrb[0].mxu0
    %v154 = vpop.f32.mrb[0].mxu0
    %v155 = vpop.f32.mrb[0].mxu0
    %156 = vdwg.mxu0
    %v157 = vld [vmem:[#allocation5] sm:$0x1]
    %v159 = vlaneseq
    %v160 = vshrl.u32 %v159, 7
    %v161 = vsub.s32 0, %v160
    %v162 = vrot.slane %v157, %v161
    %v164 = vadd.f32 %v152, %v162
    %v165 = vmax.f32 %v164, 0.0
    %v166 = vld [vmem:[%s5] sm:$0xff]
    %v167 = vld [vmem:[%s5 + $0x8] sm:$0xff]
    %v168 = vld [vmem:[%s5 + $0x10] sm:$0xff]
    %v169 = vld [vmem:[%s5 + $0x18] sm:$0xff]
    %v170 = vld [vmem:[%s6] sm:$0x1]
    %v172 = vlaneseq
    %v173 = vshrl.u32 %v172, 7
    %v174 = vsub.s32 0, %v173
    %v175 = vrot.slane %v170, %v174
    %vm177 = vcmask 261120
    %v179 = vsel %vm177, %v165, 0
    %181 = vmatprep.subr.mxu0 0.0
    %182 = vmatpush1.msra.mxu0 %v166
    %183 = vmatprep.subr.mxu0 0.0
    %184 = vmatpush1.msra.mxu0 %v167
    %185 = vmatprep.subr.mxu0 0.0
    %186 = vmatpush1.msra.mxu0 %v168
    %187 = vmatprep.subr.mxu0 0.0
    %188 = vmatpush1.msra.mxu0 %v169
    %189 = vmatprep.subr.mxu0 0.0
    %190 = vmatpush1.msra.mxu0 0.0
    %191 = vmatprep.subr.mxu0 0.0
    %192 = vmatpush1.msra.mxu0 0.0
    %193 = vmatprep.subr.mxu0 0.0
    %194 = vmatpush1.msra.mxu0 0.0
    %195 = vmatprep.subr.mxu0 0.0
    %196 = vmatpush1.msra.mxu0 0.0
    %197 = vmatprep.subr.mxu0 0.0
    %198 = vmatpush1.msra.mxu0 0.0
    %199 = vmatprep.subr.mxu0 0.0
    %200 = vmatpush1.msra.mxu0 0.0
    %201 = vmatprep.subr.mxu0 0.0
    %202 = vmatpush1.msra.mxu0 0.0
    %203 = vmatprep.subr.mxu0 0.0
    %204 = vmatpush1.msra.mxu0 0.0
    %205 = vmatprep.subr.mxu0 0.0
    %206 = vmatpush1.msra.mxu0 0.0
    %207 = vmatprep.subr.mxu0 0.0
    %208 = vmatpush1.msra.mxu0 0.0
    %209 = vmatprep.subr.mxu0 0.0
    %210 = vmatpush1.msra.mxu0 0.0
    %211 = vmatprep.subr.mxu0 0.0
    %212 = vmatpush1.msra.mxu0 0.0
    %213 = vmatprep.subr.mxu0 0.0
    %214 = vmatpush1.msra.mxu0 0.0
    %215 = vmatprep.subr.mxu0 0.0
    %216 = vmatpush1.msra.mxu0 0.0
    %217 = vmatprep.subr.mxu0 0.0
    %218 = vmatpush1.msra.mxu0 0.0
    %219 = vmatprep.subr.mxu0 0.0
    %220 = vmatpush1.msra.mxu0 0.0
    %221 = vmatprep.subr.mxu0 0.0
    %222 = vmatpush1.msra.mxu0 0.0
    %223 = vmatprep.subr.mxu0 0.0
    %224 = vmatpush1.msra.mxu0 0.0
    %225 = vmatprep.subr.mxu0 0.0
    %226 = vmatpush1.msra.mxu0 0.0
    %227 = vmatprep.subr.mxu0 0.0
    %228 = vmatpush1.msra.mxu0 0.0
    %229 = vmatprep.subr.mxu0 0.0
    %230 = vmatpush1.msra.mxu0 0.0
    %231 = vmatprep.subr.mxu0 0.0
    %232 = vmatpush1.msra.mxu0 0.0
    %233 = vmatprep.subr.mxu0 0.0
    %234 = vmatpush1.msra.mxu0 0.0
    %235 = vmatprep.subr.mxu0 0.0
    %236 = vmatpush1.msra.mxu0 0.0
    %237 = vmatprep.subr.mxu0 0.0
    %238 = vmatpush1.msra.mxu0 0.0
    %239 = vmatprep.subr.mxu0 0.0
    %240 = vmatpush1.msra.mxu0 0.0
    %241 = vmatprep.subr.mxu0 0.0
    %242 = vmatpush1.msra.mxu0 0.0
    %243 = vmatprep.subr.mxu0 0.0
    %244 = vmatpush1.msra.mxu0 0.0
    %245 = vmatprep.mubr.f32.mxu0 0.0
    %246 = vmatmul.mubr.f32.gmra.mrb[0].mxu0 %v179
    %v247 = vpop.f32.mrb[0].mxu0
    %v248 = vadd.f32 %v175, %v247
    %v249 = vpop.f32.mrb[0].mxu0
    %250 = vdwg.mxu0
    %v251 = vmax.f32 %v248, 0.0
    %v252 = vld [vmem:[%s7] sm:$0x1]
    %v253 = vld [vmem:[#allocation2] sm:$0x1]
    %v255 = vlaneseq
    %v256 = vshrl.u32 %v255, 7
    %v257 = vsub.s32 0, %v256
    %v258 = vrot.slane %v252, %v257
    %v260 = vmul.f32 %v251, %v258
    %v261 = vsel %vm177, %v260, 0.0
    %262 = vadd.xlane.f32.xlu0 %v261
    %v263 = vpop.xlane.xlu0 %262
    %v265 = vlaneseq
    %v266 = vshrl.u32 %v265, 7
    %v267 = vsub.s32 0, %v266
    %v268 = vrot.slane %v253, %v267
    %v270 = vadd.f32 %v263, %v268
    %vm271 = vcmask 7168
    %272 = vst.msk [vmem:[%s9] sm:$0xff] %vm271, %v270
    // Predicated region
    $region46: #{tpu_custom_call.1} parent=1 // pred_check
      _
    $region47: #{tpu_custom_call.1} parent=1 // pred_check_branch
      %274 = sbr.rel (0) target = $region49
    $region48: #{tpu_custom_call.1} parent=1 // pred_region
      _
    $region49: #{tpu_custom_call.1} parent=1 // pred_fallthru
      _
    // Predicated region
    $region50: #{tpu_custom_call.1} parent=1 // pred_check
      _
    $region51: #{tpu_custom_call.1} parent=1 // pred_check_branch
      %276 = sbr.rel (0) target = $region53
    $region52: #{tpu_custom_call.1} parent=1 // pred_region
      _
    $region53: #{tpu_custom_call.1} parent=1 // pred_fallthru
      _
    %277 = vsyncpa [#allocation4], 1
    %278 = vsyncpa [#allocation6], 1

</llo_original>
